<compile_context>
chip_gen: v7x
topology: tpu7x:2x2x1
jax: 0.10.0
libtpu: 0.0.40
codegen_flags: <defaults>
</compile_context>

<pallas_src>
import jax
import jax.numpy as jnp
from jax.experimental import pallas as pl
from jax.experimental.pallas import tpu as pltpu

INPUT_SIZE = 25
HIDDEN_SIZE = 5
PARAM_COLS = INPUT_SIZE + HIDDEN_SIZE + 2  # [W_ih | W_hh | b_ih | b_hh] -> 32 lanes


def pack_gru_params(w_ih, w_hh, b_ih, b_hh):
    """Pack all GRUCell parameters into one (3H, 32) f32 slab. Do this ONCE."""
    return jnp.concatenate(
        [w_ih, w_hh, b_ih[:, None], b_hh[:, None]], axis=1
    ).astype(jnp.float32)


def gru_relu_kernel(xt_ref, ht_ref, params_ref, out_ref):
    """One GRUCell step (PyTorch semantics) + ReLU, feature-major layout.

      r  = sigmoid(W_ir x + b_ir + W_hr h + b_hr)
      z  = sigmoid(W_iz x + b_iz + W_hz h + b_hz)
      n  = tanh   (W_in x + b_in + r * (W_hn h + b_hn))
      h' = (1 - z) * n + z * h
      out = relu(h')
    """
    IN, H = INPUT_SIZE, HIDDEN_SIZE

    xt = xt_ref[...].astype(jnp.float32)          # (25, Bt)  batch on lanes
    ht = ht_ref[...].astype(jnp.float32)          # (5,  Bt)
    p = params_ref[...].astype(jnp.float32)       # (15, 32)  resident params

    w_ih = p[:, 0:IN]                             # (15, 25)
    w_hh = p[:, IN:IN + H]                        # (15, 5)
    b_ih = p[:, IN + H:IN + H + 1]                # (15, 1) -> broadcast over lanes
    b_hh = p[:, IN + H + 1:IN + H + 2]            # (15, 1)

    # Projections on the MXU: gates land on the sublane axis, batch on lanes.
    gi = jnp.dot(w_ih, xt, preferred_element_type=jnp.float32) + b_ih   # (15, Bt)
    gh = jnp.dot(w_hh, ht, preferred_element_type=jnp.float32) + b_hh   # (15, Bt)

    r = jax.nn.sigmoid(gi[0:H] + gh[0:H])                 # (5, Bt)
    z = jax.nn.sigmoid(gi[H:2 * H] + gh[H:2 * H])         # (5, Bt)
    n = jnp.tanh(gi[2 * H:3 * H] + r * gh[2 * H:3 * H])   # b_hn stays inside r*(.)
    h_new = (1.0 - z) * n + z * ht                        # (5, Bt)

    out_ref[...] = jnp.maximum(h_new, 0.0).astype(out_ref.dtype)


def _pick_batch_tile(B):
    """Lane-aligned batch tile for large B; full-array single block otherwise."""
    for t in (2048, 1024, 512, 256, 128):
        if B % t == 0:
            return t
    return B


def simple_gru_pallas(x, states, params):
    """x: (B, 25), states: (B, 5), params: packed (15, 32).  Returns (B, 5)."""
    B = x.shape[0]
    xt = x.T        # (25, B)  layout plumbing only
    ht = states.T   # (5,  B)

    b_tile = _pick_batch_tile(B)
    grid = (B // b_tile,)

    out_t = pl.pallas_call(
        gru_relu_kernel,
        out_shape=jax.ShapeDtypeStruct((HIDDEN_SIZE, B), x.dtype),
        grid=grid,
        in_specs=[
            pl.BlockSpec((INPUT_SIZE, b_tile), lambda i: (0, i)),
            pl.BlockSpec((HIDDEN_SIZE, b_tile), lambda i: (0, i)),
            # Parameter slab: same block for every grid step -> stays VMEM-resident.
            pl.BlockSpec((3 * HIDDEN_SIZE, PARAM_COLS), lambda i: (0, 0)),
        ],
        out_specs=pl.BlockSpec((HIDDEN_SIZE, b_tile), lambda i: (0, i)),
        compiler_params=pltpu.CompilerParams(
            dimension_semantics=("parallel",),   # v7x megacore splits the batch grid
        ),
    )(xt, ht, params)

    return out_t.T   # back to (B, 5) to match the module's output layout


def simple_gru_ref(x, states, w_ih, w_hh, b_ih, b_hh):
    """Pure-JAX reference mirroring torch.nn.GRUCell + ReLU."""
    gi = x @ w_ih.T + b_ih
    gh = states @ w_hh.T + b_hh
    H = HIDDEN_SIZE
    i_r, i_z, i_n = gi[:, :H], gi[:, H:2 * H], gi[:, 2 * H:]
    h_r, h_z, h_n = gh[:, :H], gh[:, H:2 * H], gh[:, 2 * H:]
    r = jax.nn.sigmoid(i_r + h_r)
    z = jax.nn.sigmoid(i_z + h_z)
    n = jnp.tanh(i_n + r * h_n)
    h_new = (1.0 - z) * n + z * states
    return jnp.maximum(h_new, 0.0)


if __name__ == "__main__":
    key = jax.random.PRNGKey(0)
    k_x, k_h, k_wih, k_whh, k_bih, k_bhh, k_x2, k_h2 = jax.random.split(key, 8)

    # Deterministic synthetic parameters (same shapes / init range as nn.GRUCell).
    bound = 1.0 / jnp.sqrt(jnp.float32(HIDDEN_SIZE))
    w_ih = jax.random.uniform(k_wih, (3 * HIDDEN_SIZE, INPUT_SIZE),
                              jnp.float32, -bound, bound)   # (15, 25)
    w_hh = jax.random.uniform(k_whh, (3 * HIDDEN_SIZE, HIDDEN_SIZE),
                              jnp.float32, -bound, bound)   # (15, 5)
    b_ih = jax.random.uniform(k_bih, (3 * HIDDEN_SIZE,), jnp.float32, -bound, bound)
    b_hh = jax.random.uniform(k_bhh, (3 * HIDDEN_SIZE,), jnp.float32, -bound, bound)

    # Pack parameters ONCE (hoisted out of the per-call path).
    params = pack_gru_params(w_ih, w_hh, b_ih, b_hh)         # (15, 32)

    # --- small-batch check (matches the module's test usage: inp = (x, states)) ---
    B = 2
    x = jax.random.normal(k_x, (B, INPUT_SIZE), jnp.float32)        # (2, 25)
    states = jax.random.normal(k_h, (B, HIDDEN_SIZE), jnp.float32)  # (2, 5)

    out = jax.block_until_ready(simple_gru_pallas(x, states, params))
    ref = simple_gru_ref(x, states, w_ih, w_hh, b_ih, b_hh)
    assert out.shape == (B, HIDDEN_SIZE)
    assert jnp.allclose(out, ref, atol=1e-5, rtol=1e-5), "Pallas GRU mismatch (B=2)"

    # --- tiled-batch check (exercises the batch grid + parallel semantics path) ---
    B2 = 256
    x2 = jax.random.normal(k_x2, (B2, INPUT_SIZE), jnp.float32)
    states2 = jax.random.normal(k_h2, (B2, HIDDEN_SIZE), jnp.float32)
    out2 = jax.block_until_ready(simple_gru_pallas(x2, states2, params))
    ref2 = simple_gru_ref(x2, states2, w_ih, w_hh, b_ih, b_hh)
    assert out2.shape == (B2, HIDDEN_SIZE)
    assert jnp.allclose(out2, ref2, atol=1e-5, rtol=1e-5), "Pallas GRU mismatch (B=256)"

    print("KERNEL_OK")
</pallas_src>

<mosaic_0001>
module attributes {stable_mosaic.version = 11 : i64} {
  func.func @gru_relu_kernel(%arg0: i32, %arg1: memref<25x2xf32, #tpu.memory_space<vmem>>, %arg2: memref<5x2xf32, #tpu.memory_space<vmem>>, %arg3: memref<15x32xf32, #tpu.memory_space<vmem>>, %arg4: memref<5x2xf32, #tpu.memory_space<vmem>>) attributes {dimension_semantics = [#tpu.dimension_semantics<parallel>], iteration_bounds = array<i64: 1>, scalar_prefetch = 0 : i64, scratch_operands = 0 : i64, tpu.core_type = #tpu.core_type<tc>, window_params = [{transform_indices = @transform_0, window_bounds = array<i64: 25, 2>}, {transform_indices = @transform_1, window_bounds = array<i64: 5, 2>}, {pipeline_mode = #tpu.pipeline_mode<synchronous>, transform_indices = @transform_2, window_bounds = array<i64: 15, 32>}, {transform_indices = @transform_3, window_bounds = array<i64: 5, 2>}]} {
    %c0 = arith.constant 0 : index
    %c0_0 = arith.constant 0 : index
    %0 = vector.load %arg1[%c0, %c0_0] : memref<25x2xf32, #tpu.memory_space<vmem>>, vector<25x2xf32>
    %c0_1 = arith.constant 0 : index
    %c0_2 = arith.constant 0 : index
    %1 = vector.load %arg2[%c0_1, %c0_2] : memref<5x2xf32, #tpu.memory_space<vmem>>, vector<5x2xf32>
    %c0_3 = arith.constant 0 : index
    %c0_4 = arith.constant 0 : index
    %2 = vector.load %arg3[%c0_3, %c0_4] : memref<15x32xf32, #tpu.memory_space<vmem>>, vector<15x32xf32>
    %3 = vector.extract_strided_slice %2 {offsets = [0, 0], sizes = [15, 25], strides = [1, 1]} : vector<15x32xf32> to vector<15x25xf32>
    %4 = vector.extract_strided_slice %2 {offsets = [0, 25], sizes = [15, 5], strides = [1, 1]} : vector<15x32xf32> to vector<15x5xf32>
    %5 = vector.extract_strided_slice %2 {offsets = [0, 30], sizes = [15, 1], strides = [1, 1]} : vector<15x32xf32> to vector<15x1xf32>
    %6 = vector.extract_strided_slice %2 {offsets = [0, 31], sizes = [15, 1], strides = [1, 1]} : vector<15x32xf32> to vector<15x1xf32>
    %cst = arith.constant dense<0.000000e+00> : vector<15x2xf32>
    %7 = tpu.matmul %3, %0, %cst {dimension_numbers = #tpu.dot_dimension_numbers<[1], [0], [0], [1], [0, 0, 1, 1], [], []>} : vector<15x25xf32>, vector<25x2xf32>, vector<15x2xf32> -> vector<15x2xf32>
    %8 = vector.broadcast %5 : vector<15x1xf32> to vector<15x2xf32>
    %9 = arith.addf %7, %8 : vector<15x2xf32>
    %cst_5 = arith.constant dense<0.000000e+00> : vector<15x2xf32>
    %10 = tpu.matmul %4, %1, %cst_5 {dimension_numbers = #tpu.dot_dimension_numbers<[1], [0], [0], [1], [0, 0, 1, 1], [], []>} : vector<15x5xf32>, vector<5x2xf32>, vector<15x2xf32> -> vector<15x2xf32>
    %11 = vector.broadcast %6 : vector<15x1xf32> to vector<15x2xf32>
    %12 = arith.addf %10, %11 : vector<15x2xf32>
    %13 = vector.extract_strided_slice %9 {offsets = [0, 0], sizes = [5, 2], strides = [1, 1]} : vector<15x2xf32> to vector<5x2xf32>
    %14 = vector.extract_strided_slice %12 {offsets = [0, 0], sizes = [5, 2], strides = [1, 1]} : vector<15x2xf32> to vector<5x2xf32>
    %15 = arith.addf %13, %14 : vector<5x2xf32>
    %16 = arith.negf %15 : vector<5x2xf32>
    %17 = math.exp %16 : vector<5x2xf32>
    %cst_6 = arith.constant 1.000000e+00 : f32
    %18 = vector.broadcast %cst_6 : f32 to vector<5x2xf32>
    %19 = arith.addf %18, %17 : vector<5x2xf32>
    %20 = arith.divf %18, %19 : vector<5x2xf32>
    %21 = vector.extract_strided_slice %9 {offsets = [5, 0], sizes = [5, 2], strides = [1, 1]} : vector<15x2xf32> to vector<5x2xf32>
    %22 = vector.extract_strided_slice %12 {offsets = [5, 0], sizes = [5, 2], strides = [1, 1]} : vector<15x2xf32> to vector<5x2xf32>
    %23 = arith.addf %21, %22 : vector<5x2xf32>
    %24 = arith.negf %23 : vector<5x2xf32>
    %25 = math.exp %24 : vector<5x2xf32>
    %cst_7 = arith.constant 1.000000e+00 : f32
    %26 = vector.broadcast %cst_7 : f32 to vector<5x2xf32>
    %27 = arith.addf %26, %25 : vector<5x2xf32>
    %28 = arith.divf %26, %27 : vector<5x2xf32>
    %29 = vector.extract_strided_slice %9 {offsets = [10, 0], sizes = [5, 2], strides = [1, 1]} : vector<15x2xf32> to vector<5x2xf32>
    %30 = vector.extract_strided_slice %12 {offsets = [10, 0], sizes = [5, 2], strides = [1, 1]} : vector<15x2xf32> to vector<5x2xf32>
    %31 = arith.mulf %20, %30 : vector<5x2xf32>
    %32 = arith.addf %29, %31 : vector<5x2xf32>
    %33 = math.tanh %32 : vector<5x2xf32>
    %cst_8 = arith.constant 1.000000e+00 : f32
    %34 = vector.broadcast %cst_8 : f32 to vector<5x2xf32>
    %35 = arith.subf %34, %28 : vector<5x2xf32>
    %36 = arith.mulf %35, %33 : vector<5x2xf32>
    %37 = arith.mulf %28, %1 : vector<5x2xf32>
    %38 = arith.addf %36, %37 : vector<5x2xf32>
    %cst_9 = arith.constant 0.000000e+00 : f32
    %39 = vector.broadcast %cst_9 : f32 to vector<5x2xf32>
    %40 = arith.maximumf %38, %39 : vector<5x2xf32>
    %c0_10 = arith.constant 0 : index
    %c0_11 = arith.constant 0 : index
    %41 = vector.load %arg4[%c0_10, %c0_11] : memref<5x2xf32, #tpu.memory_space<vmem>>, vector<5x2xf32>
    tpu.vector_store %arg4[%c0_10, %c0_11], %40 {strides = array<i32>} : memref<5x2xf32, #tpu.memory_space<vmem>>, vector<5x2xf32>,
    return
  }
  func.func @transform_0(%arg0: i32) -> (i32, i32) {
    %c0_i32 = arith.constant 0 : i32
    %c0_i32_0 = arith.constant 0 : i32
    return %c0_i32, %arg0 : i32, i32
  }
  func.func @transform_1(%arg0: i32) -> (i32, i32) {
    %c0_i32 = arith.constant 0 : i32
    %c0_i32_0 = arith.constant 0 : i32
    return %c0_i32, %arg0 : i32, i32
  }
  func.func @transform_2(%arg0: i32) -> (i32, i32) {
    %c0_i32 = arith.constant 0 : i32
    %c0_i32_0 = arith.constant 0 : i32
    %c0_i32_1 = arith.constant 0 : i32
    return %c0_i32, %c0_i32_0 : i32, i32
  }
  func.func @transform_3(%arg0: i32) -> (i32, i32) {
    %c0_i32 = arith.constant 0 : i32
    %c0_i32_0 = arith.constant 0 : i32
    return %c0_i32, %arg0 : i32, i32
  }
}

</mosaic_0001>

<llo_original>
// kernel: tpu_custom_call.1
$region0: #{tpu_custom_call.1}
  #allocation0 [shape = 'u32[]', space=smem, size = 0x4, offset = 0x4, fixed_abs, tag = 'smem constant byte address 0x4 - core index']
  #allocation1 [shape = 'u32[144,128]{1,0:T(1,128)}', space=vmem, size = 0x12000, scoped, tag = 'internal scratch']
  %s0 = inlined_call_operand.vmem [shape: f32[25,2], index: 0, kind: input, shape index: {}]
  %s1 = inlined_call_operand.vmem [shape: f32[5,2], index: 1, kind: input, shape index: {}]
  %s2 = inlined_call_operand.vmem [shape: f32[15,32], index: 2, kind: input, shape index: {}]
  %s3 = inlined_call_operand.vmem [shape: f32[5,2], index: 3, kind: output, shape index: {}]
  %s4 = sld [smem:[#allocation0]]
  $region22: #{tpu_custom_call.1} parent=0
    _
  %s6 = ssub.s32 1, %s4
  %s7 = scalar_select 0, %s6, %s4
  // Predicated region
  $region2: #{tpu_custom_call.1} parent=0 // pred_check
    _
  $region3: #{tpu_custom_call.1} parent=0 // pred_check_branch
    %9 = sbr.rel (0) target = $region5
  $region4: #{tpu_custom_call.1} parent=0 // pred_region
    _
  $region5: #{tpu_custom_call.1} parent=0 // pred_fallthru
    _
  // Predicated region
  $region6: #{tpu_custom_call.1} parent=0 // pred_check
    _
  $region7: #{tpu_custom_call.1} parent=0 // pred_check_branch
    %11 = sbr.rel (0) target = $region9
  $region8: #{tpu_custom_call.1} parent=0 // pred_region
    _
  $region9: #{tpu_custom_call.1} parent=0 // pred_fallthru
    _
  // Predicated region
  $region10: #{tpu_custom_call.1} parent=0 // pred_check
    _
  $region11: #{tpu_custom_call.1} parent=0 // pred_check_branch
    %13 = sbr.rel (0) target = $region13
  $region12: #{tpu_custom_call.1} parent=0 // pred_region
    _
  $region13: #{tpu_custom_call.1} parent=0 // pred_fallthru
    _
  %v14 = vld [vmem:[%s0] sm:$0xff]
  %v15 = vld [vmem:[%s0 + $0x8] sm:$0xff]
  %v16 = vld [vmem:[%s0 + $0x10] sm:$0xff]
  %v17 = vld [vmem:[%s0 + $0x18] sm:$0x1]
  %v18 = vld [vmem:[%s1] sm:$0x1f]
  %v19 = vld [vmem:[%s2] sm:$0xff]
  %v20 = vld [vmem:[%s2 + $0x8] sm:$0x7f]
  %22 = vset.pattern.permute.xlu0 30
  %23 = vperm.xlu0 %22, %v19
  %v24 = vpop.permute.xlu0 %23
  %27 = vset.pattern.permute.xlu0 30
  %28 = vperm.xlu0 %27, %v20
  %v29 = vpop.permute.xlu0 %28
  %vm31 = vcmask 203776
  %v32 = vsel %vm31, %v19, 0
  %v34 = vsel %vm31, %v20, 0
  %vm36 = vcmask 1040384
  %v38 = vsel %vm36, %v17, 0
  %40 = vmatprep.subr.mxu0 0.0
  %41 = vmatpush1.msra.mxu0 %v14
  %42 = vmatprep.subr.mxu0 0.0
  %43 = vmatpush1.msra.mxu0 %v15
  %44 = vmatprep.subr.mxu0 0.0
  %45 = vmatpush1.msra.mxu0 %v16
  %46 = vmatprep.subr.mxu0 0.0
  %47 = vmatpush1.msra.mxu0 %v38
  %48 = vmatprep.subr.mxu0 0.0
  %49 = vmatpush1.msra.mxu0 0.0
  %50 = vmatprep.subr.mxu0 0.0
  %51 = vmatpush1.msra.mxu0 0.0
  %52 = vmatprep.subr.mxu0 0.0
  %53 = vmatpush1.msra.mxu0 0.0
  %54 = vmatprep.subr.mxu0 0.0
  %55 = vmatpush1.msra.mxu0 0.0
  %56 = vmatprep.subr.mxu0 0.0
  %57 = vmatpush1.msra.mxu0 0.0
  %58 = vmatprep.subr.mxu0 0.0
  %59 = vmatpush1.msra.mxu0 0.0
  %60 = vmatprep.subr.mxu0 0.0
  %61 = vmatpush1.msra.mxu0 0.0
  %62 = vmatprep.subr.mxu0 0.0
  %63 = vmatpush1.msra.mxu0 0.0
  %64 = vmatprep.subr.mxu0 0.0
  %65 = vmatpush1.msra.mxu0 0.0
  %66 = vmatprep.subr.mxu0 0.0
  %67 = vmatpush1.msra.mxu0 0.0
  %68 = vmatprep.subr.mxu0 0.0
  %69 = vmatpush1.msra.mxu0 0.0
  %70 = vmatprep.subr.mxu0 0.0
  %71 = vmatpush1.msra.mxu0 0.0
  %72 = vmatprep.subr.mxu0 0.0
  %73 = vmatpush1.msra.mxu0 0.0
  %74 = vmatprep.subr.mxu0 0.0
  %75 = vmatpush1.msra.mxu0 0.0
  %76 = vmatprep.subr.mxu0 0.0
  %77 = vmatpush1.msra.mxu0 0.0
  %78 = vmatprep.subr.mxu0 0.0
  %79 = vmatpush1.msra.mxu0 0.0
  %80 = vmatprep.subr.mxu0 0.0
  %81 = vmatpush1.msra.mxu0 0.0
  %82 = vmatprep.subr.mxu0 0.0
  %83 = vmatpush1.msra.mxu0 0.0
  %84 = vmatprep.subr.mxu0 0.0
  %85 = vmatpush1.msra.mxu0 0.0
  %86 = vmatprep.subr.mxu0 0.0
  %87 = vmatpush1.msra.mxu0 0.0
  %88 = vmatprep.subr.mxu0 0.0
  %89 = vmatpush1.msra.mxu0 0.0
  %90 = vmatprep.subr.mxu0 0.0
  %91 = vmatpush1.msra.mxu0 0.0
  %92 = vmatprep.subr.mxu0 0.0
  %93 = vmatpush1.msra.mxu0 0.0
  %94 = vmatprep.subr.mxu0 0.0
  %95 = vmatpush1.msra.mxu0 0.0
  %96 = vmatprep.subr.mxu0 0.0
  %97 = vmatpush1.msra.mxu0 0.0
  %98 = vmatprep.subr.mxu0 0.0
  %99 = vmatpush1.msra.mxu0 0.0
  %100 = vmatprep.subr.mxu0 0.0
  %101 = vmatpush1.msra.mxu0 0.0
  %102 = vmatprep.subr.mxu0 0.0
  %103 = vmatpush1.msra.mxu0 0.0
  %104 = vmatprep.mubr.f32.mxu0 0.0
  %105 = vmatmul.mubr.f32.gmra.mrb[0].mxu0 %v32
  %v106 = vpop.f32.mrb[0].mxu0
  %v107 = vadd.f32 %v24, %v106
  %v108 = vpop.f32.mrb[0].mxu0
  %109 = vmatprep.mubr.f32.mxu0 0.0
  %110 = vmatmul.mubr.f32.gmra.mrb[0].mxu0 %v34
  %v111 = vpop.f32.mrb[0].mxu0
  %v112 = vadd.f32 %v29, %v111
  %v113 = vpop.f32.mrb[0].mxu0
  %114 = vdwg.mxu0
  %115 = vset.pattern.permute.xlu0 31
  %116 = vperm.xlu0 %115, %v19
  %v117 = vpop.permute.xlu0 %116
  %119 = vset.pattern.permute.xlu0 31
  %120 = vperm.xlu0 %119, %v20
  %v121 = vpop.permute.xlu0 %120
  %123 = vrot.lane.b32.xlu0 %v19, 103
  %v124 = vpop.permute.xlu0 %123
  %125 = vrot.lane.b32.xlu0 %v20, 103
  %v126 = vpop.permute.xlu0 %125
  %vm127 = vcmask 39936
  %v128 = vsel %vm127, %v124, 0
  %v130 = vsel %vm127, %v126, 0
  %vm132 = vcmask 1044480
  %v134 = vsel %vm132, %v18, 0
  %136 = vmatprep.subr.mxu0 0.0
  %137 = vmatpush1.msra.mxu0 %v134
  %138 = vmatprep.subr.mxu0 0.0
  %139 = vmatpush1.msra.mxu0 0.0
  %140 = vmatprep.subr.mxu0 0.0
  %141 = vmatpush1.msra.mxu0 0.0
  %142 = vmatprep.subr.mxu0 0.0
  %143 = vmatpush1.msra.mxu0 0.0
  %144 = vmatprep.subr.mxu0 0.0
  %145 = vmatpush1.msra.mxu0 0.0
  %146 = vmatprep.subr.mxu0 0.0
  %147 = vmatpush1.msra.mxu0 0.0
  %148 = vmatprep.subr.mxu0 0.0
  %149 = vmatpush1.msra.mxu0 0.0
  %150 = vmatprep.subr.mxu0 0.0
  %151 = vmatpush1.msra.mxu0 0.0
  %152 = vmatprep.subr.mxu0 0.0
  %153 = vmatpush1.msra.mxu0 0.0
  %154 = vmatprep.subr.mxu0 0.0
  %155 = vmatpush1.msra.mxu0 0.0
  %156 = vmatprep.subr.mxu0 0.0
  %157 = vmatpush1.msra.mxu0 0.0
  %158 = vmatprep.subr.mxu0 0.0
  %159 = vmatpush1.msra.mxu0 0.0
  %160 = vmatprep.subr.mxu0 0.0
  %161 = vmatpush1.msra.mxu0 0.0
  %162 = vmatprep.subr.mxu0 0.0
  %163 = vmatpush1.msra.mxu0 0.0
  %164 = vmatprep.subr.mxu0 0.0
  %165 = vmatpush1.msra.mxu0 0.0
  %166 = vmatprep.subr.mxu0 0.0
  %167 = vmatpush1.msra.mxu0 0.0
  %168 = vmatprep.subr.mxu0 0.0
  %169 = vmatpush1.msra.mxu0 0.0
  %170 = vmatprep.subr.mxu0 0.0
  %171 = vmatpush1.msra.mxu0 0.0
  %172 = vmatprep.subr.mxu0 0.0
  %173 = vmatpush1.msra.mxu0 0.0
  %174 = vmatprep.subr.mxu0 0.0
  %175 = vmatpush1.msra.mxu0 0.0
  %176 = vmatprep.subr.mxu0 0.0
  %177 = vmatpush1.msra.mxu0 0.0
  %178 = vmatprep.subr.mxu0 0.0
  %179 = vmatpush1.msra.mxu0 0.0
  %180 = vmatprep.subr.mxu0 0.0
  %181 = vmatpush1.msra.mxu0 0.0
  %182 = vmatprep.subr.mxu0 0.0
  %183 = vmatpush1.msra.mxu0 0.0
  %184 = vmatprep.subr.mxu0 0.0
  %185 = vmatpush1.msra.mxu0 0.0
  %186 = vmatprep.subr.mxu0 0.0
  %187 = vmatpush1.msra.mxu0 0.0
  %188 = vmatprep.subr.mxu0 0.0
  %189 = vmatpush1.msra.mxu0 0.0
  %190 = vmatprep.subr.mxu0 0.0
  %191 = vmatpush1.msra.mxu0 0.0
  %192 = vmatprep.subr.mxu0 0.0
  %193 = vmatpush1.msra.mxu0 0.0
  %194 = vmatprep.subr.mxu0 0.0
  %195 = vmatpush1.msra.mxu0 0.0
  %196 = vmatprep.subr.mxu0 0.0
  %197 = vmatpush1.msra.mxu0 0.0
  %198 = vmatprep.subr.mxu0 0.0
  %199 = vmatpush1.msra.mxu0 0.0
  %200 = vmatprep.mubr.f32.mxu0 0.0
  %201 = vmatmul.mubr.f32.gmra.mrb[0].mxu0 %v128
  %v202 = vpop.f32.mrb[0].mxu0
  %v203 = vadd.f32 %v117, %v202
  %v204 = vpop.f32.mrb[0].mxu0
  %205 = vmatprep.mubr.f32.mxu0 0.0
  %206 = vmatmul.mubr.f32.gmra.mrb[0].mxu0 %v130
  %v207 = vpop.f32.mrb[0].mxu0
  %v208 = vadd.f32 %v121, %v207
  %v209 = vpop.f32.mrb[0].mxu0
  %210 = vdwg.mxu0
  %v211 = vadd.f32 %v107, %v203
  %v212 = vxor.u32 %v211, 2147483648
  %v213 = vmul.f32 %v212, 1.442695
  %v214 = vpow.pop %v213
  %v215 = vadd.f32 %v214, 1.0
  %v216 = vrcp.pop %v215
  %v217 = vmul.f32 1.0, %v216
  %v218 = vadd.f32 %v112, %v208
  %v219 = vxor.u32 %v218, 2147483648
  %v220 = vmul.f32 %v219, 1.442695
  %v221 = vpow.pop %v220
  %v222 = vadd.f32 %v221, 1.0
  %v223 = vrcp.pop %v222
  %v224 = vmul.f32 1.0, %v223
  %v226 = vrot.slane %v208, 2
  %v228 = vmul.f32 %v217, %v226
  %v230 = vrot.slane %v228, 6
  %v232 = vadd.f32 %v112, %v230
  %v233 = vtanh.pop %v232
  %v234 = vsub.f32 1.0, %v217
  %v235 = vsub.f32 1.0, %v224
  %v237 = vrot.slane %v233, 5
  %v239 = vmul.f32 %v234, %v237
  %v240 = vmul.f32 %v235, %v237
  %v241 = vrot.slane %v18, 3
  %v243 = vmul.f32 %v217, %v241
  %v244 = vmul.f32 %v224, %v241
  %v245 = vadd.f32 %v239, %v243
  %v246 = vadd.f32 %v240, %v244
  %v247 = vmax.f32 %v245, 0.0
  %v248 = vmax.f32 %v246, 0.0
  %vm249 = vcmask 15365
  %250 = vst.msk [vmem:[%s3 - $0x5] sm:$0xe0] %vm249, %v247
  %vm251 = vcmask 9216
  %252 = vst.msk [vmem:[%s3 + $0x3] sm:$0x3] %vm251, %v248
  // Predicated region
  $region14: #{tpu_custom_call.1} parent=0 // pred_check
    _
  $region15: #{tpu_custom_call.1} parent=0 // pred_check_branch
    %254 = sbr.rel (0) target = $region17
  $region16: #{tpu_custom_call.1} parent=0 // pred_region
    _
  $region17: #{tpu_custom_call.1} parent=0 // pred_fallthru
    _
  // Predicated region
  $region18: #{tpu_custom_call.1} parent=0 // pred_check
    _
  $region19: #{tpu_custom_call.1} parent=0 // pred_check_branch
    %256 = sbr.rel (0) target = $region21
  $region20: #{tpu_custom_call.1} parent=0 // pred_region
    _
  $region21: #{tpu_custom_call.1} parent=0 // pred_fallthru
    _

</llo_original>
